<compile_context>
chip_gen: v7x
topology: tpu7x:2x2x1
jax: 0.10.0
libtpu: 0.0.40
codegen_flags: <defaults>
</compile_context>

<pallas_src>
import functools
import math

import jax
import jax.numpy as jnp
from jax.experimental import pallas as pl
from jax.experimental.pallas import tpu as pltpu


def _round_up(v, m):
    return ((v + m - 1) // m) * m


def _physical_vmem_bytes():
    """Physical VMEM per core; conservative 64 MiB (v7x) if the query fails."""
    try:
        info = pltpu.get_tpu_info()
        v = getattr(info, "vmem_capacity_bytes", None)
        if v:
            return int(v)
    except Exception:
        pass
    return 64 << 20


def _lora_linear_kernel(x_ref, w_ref, a_ref, bsc_ref, bias_ref, o_ref,
                        acc_ref, xa_ref, *, tk, reuse_xa):
    j = pl.program_id(1)          # N tile
    k = pl.program_id(2)          # K tile (reduction, innermost)
    nk = pl.num_programs(2)

    @pl.when(k == 0)
    def _init_acc():
        acc_ref[...] = jnp.zeros_like(acc_ref)

    x = x_ref[...]                                                  # (tm, tk)
    acc_ref[...] += jnp.dot(x, w_ref[...],
                            preferred_element_type=jnp.float32)     # (tm, tn)

    def xa_step():
        # A is K-resident (block = (K_pad, R_pad)).  If there is a single K
        # step the block is exactly the tile; otherwise slice the current
        # K tile out with an aligned (multiple-of-128) sublane offset.
        if a_ref.shape[0] == tk:
            a_blk = a_ref[...]
        else:
            a_blk = a_ref[pl.ds(pl.multiple_of(k * tk, tk), tk), :]
        xa_ref[...] += jnp.dot(x, a_blk, preferred_element_type=jnp.float32)

    if reuse_xa:
        # x @ A only depends on the row tile: accumulate it while j == 0 and
        # reuse the finished (tm, R_pad) scratch for every j > 0 tile of the
        # same row tile.  Requires: i outermost, sequential (row-major) grid,
        # N axis marked "arbitrary".
        @pl.when((j == 0) & (k == 0))
        def _init_xa():
            xa_ref[...] = jnp.zeros_like(xa_ref)

        @pl.when(j == 0)
        def _acc_xa():
            xa_step()
    else:
        # N is "parallel" in this mode; recompute x @ A for every (i, j) tile.
        @pl.when(k == 0)
        def _init_xa():
            xa_ref[...] = jnp.zeros_like(xa_ref)

        xa_step()

    @pl.when(k == nk - 1)
    def _finalize():
        # alpha is already folded into bsc (= alpha * B) in the wrapper.
        lora = jnp.dot(xa_ref[...].astype(bsc_ref.dtype), bsc_ref[...],
                       preferred_element_type=jnp.float32)          # (tm, tn)
        o_ref[...] = (acc_ref[...] + bias_ref[...] + lora).astype(o_ref.dtype)


def prepare_lora_linear_params(w, b, a, bb, alpha, *, tn=512, tk=1024,
                               compute_dtype=jnp.bfloat16):
    """One-time prep of the static operands (pad + cast). Do NOT call per step.

    w: (in_dim, out_dim), b: (out_dim,), a: (in_dim, rank), bb: (rank, out_dim).
    """
    in_dim, out_dim = w.shape
    rank = a.shape[1]
    cdt = jnp.dtype(compute_dtype)

    tn = min(_round_up(tn, 128), _round_up(out_dim, 128))
    tk = min(_round_up(tk, 128), _round_up(in_dim, 128))
    N_pad = _round_up(out_dim, tn)
    K_pad = _round_up(in_dim, tk)
    R_pad = _round_up(rank, 128)     # lane-dense LoRA rank (zero padded)

    def pad2(m, rows, cols):
        pr, pc = rows - m.shape[0], cols - m.shape[1]
        return jnp.pad(m, ((0, pr), (0, pc))) if (pr or pc) else m

    # Zero padding is exact: padded K rows/cols, padded rank rows/cols and
    # padded N cols contribute zero; padded M rows are sliced off afterwards.
    w_p = pad2(w, K_pad, N_pad).astype(cdt)
    a_p = pad2(a, K_pad, R_pad).astype(cdt)
    bsc = pad2(jnp.asarray(alpha, jnp.float32) * bb.astype(jnp.float32),
               R_pad, N_pad).astype(cdt)                     # alpha folded in
    bias2d = pad2(b.astype(jnp.float32).reshape(1, out_dim), 1, N_pad)

    return dict(w=w_p, a=a_p, bsc=bsc, bias=bias2d,
                in_dim=in_dim, out_dim=out_dim, rank=rank,
                tn=tn, tk=tk, N_pad=N_pad, K_pad=K_pad, R_pad=R_pad,
                compute_dtype=cdt)


def linear_with_lora_apply(x, params, *, tm=512, k_resident=None):
    """x: (..., in_dim) -> (..., out_dim) using prepared params."""
    lead = x.shape[:-1]
    in_dim, out_dim = params["in_dim"], params["out_dim"]
    assert x.shape[-1] == in_dim
    cdt = params["compute_dtype"]
    tn, tk = params["tn"], params["tk"]
    N_pad, K_pad, R_pad = params["N_pad"], params["K_pad"], params["R_pad"]
    out_dtype = x.dtype

    M = math.prod(lead) if lead else 1
    tm = min(_round_up(tm, 16), _round_up(M, 16))   # bf16-safe sublane multiple
    M_pad = _round_up(M, tm)
    grid_m = M_pad // tm
    grid_n = N_pad // tn

    cdt_size = jnp.dtype(cdt).itemsize
    out_size = jnp.dtype(out_dtype).itemsize

    phys = _physical_vmem_bytes()
    # v7x: 64 MiB physical -> ~56 MiB usable; v5e/v6e: 128 MiB -> cap at 100 MiB.
    cap = max(min(phys - (8 << 20), 100 << 20), 32 << 20)

    def vmem_need(tk_eff):
        return (2 * tm * tk_eff * cdt_size          # x blocks (double-buffered)
                + 2 * tk_eff * tn * cdt_size        # W blocks
                + 2 * K_pad * R_pad * cdt_size      # LoRA A (K-resident)
                + 2 * R_pad * tn * cdt_size         # alpha * B
                + 2 * 8 * tn * 4                    # bias (f32)
                + 2 * tm * tn * out_size            # output at OUTPUT dtype
                + tm * tn * 4 + tm * R_pad * 4      # f32 scratch accumulators
                + (4 << 20))                        # Mosaic internal headroom

    # Prefer a single K step when it fits: x and W become K-resident per tile,
    # so x is read from HBM once per row tile instead of once per N tile.
    if k_resident is None:
        k_resident = vmem_need(K_pad) <= cap
    if k_resident and vmem_need(K_pad) <= cap:
        tk = K_pad
    grid_k = K_pad // tk

    # xa-reuse across N tiles needs N "arbitrary" (sequential).  For
    # single-row-tile (decode) shapes drop the reuse so N can be "parallel"
    # (keeps both v7x TensorCores busy); x @ A recompute is cheap at small M.
    reuse_xa = (grid_m >= 2) or (grid_n == 1)

    vmem_limit = int(min(max(vmem_need(tk), 32 << 20), cap))

    # Only x is padded / cast per call (skipped when already tile multiples).
    x2d = x.reshape(M, in_dim)
    if (M_pad - M) or (K_pad - in_dim):
        x2d = jnp.pad(x2d, ((0, M_pad - M), (0, K_pad - in_dim)))
    x2d = x2d.astype(cdt)

    kernel = functools.partial(_lora_linear_kernel, tk=tk, reuse_xa=reuse_xa)

    rank = params["rank"]
    cost = pl.CostEstimate(
        flops=2 * M * in_dim * (out_dim + rank) + 2 * M * rank * out_dim,
        transcendentals=0,
        bytes_accessed=int((x2d.size + params["w"].size + params["a"].size
                            + params["bsc"].size) * cdt_size
                           + params["bias"].size * 4
                           + M_pad * N_pad * out_size),
    )

    out2d = pl.pallas_call(
        kernel,
        out_shape=jax.ShapeDtypeStruct((M_pad, N_pad), out_dtype),
        grid_spec=pltpu.PrefetchScalarGridSpec(
            num_scalar_prefetch=0,
            grid=(grid_m, grid_n, grid_k),
            in_specs=[
                pl.BlockSpec((tm, tk), lambda i, j, k: (i, k)),        # x
                pl.BlockSpec((tk, tn), lambda i, j, k: (k, j)),        # W
                pl.BlockSpec((K_pad, R_pad), lambda i, j, k: (0, 0)),  # A (resident)
                pl.BlockSpec((R_pad, tn), lambda i, j, k: (0, j)),     # alpha * B
                pl.BlockSpec((1, tn), lambda i, j, k: (0, j)),         # bias
            ],
            out_specs=pl.BlockSpec((tm, tn), lambda i, j, k: (i, j)),
            scratch_shapes=[
                pltpu.VMEM((tm, tn), jnp.float32),      # base accumulator
                pltpu.VMEM((tm, R_pad), jnp.float32),   # x @ A accumulator
            ],
        ),
        compiler_params=pltpu.CompilerParams(
            dimension_semantics=("parallel",
                                 "arbitrary" if reuse_xa else "parallel",
                                 "arbitrary"),
            vmem_limit_bytes=vmem_limit,
        ),
        cost_estimate=cost,
    )(x2d, params["w"], params["a"], params["bsc"], params["bias"])

    return out2d[:M, :out_dim].reshape(*lead, out_dim)


def linear_with_lora(x, w, b, a, bb, alpha, *, tm=512, tn=512, tk=1024,
                     compute_dtype=jnp.bfloat16, k_resident=None):
    """Convenience wrapper (prep + apply). For repeated calls, prepare once."""
    params = prepare_lora_linear_params(w, b, a, bb, alpha, tn=tn, tk=tk,
                                        compute_dtype=compute_dtype)
    return linear_with_lora_apply(x, params, tm=tm, k_resident=k_resident)


def init_params(key, in_dim, out_dim, rank):
    """Deterministic parameter init mirroring nn.Linear + LoraLayer.__init__."""
    k_w, k_b, k_a = jax.random.split(key, 3)
    bound_w = 1.0 / math.sqrt(in_dim)
    w = jax.random.uniform(k_w, (in_dim, out_dim), jnp.float32,
                           minval=-bound_w, maxval=bound_w)  # stored as (in, out)
    bias = jax.random.uniform(k_b, (out_dim,), jnp.float32,
                              minval=-bound_w, maxval=bound_w)
    bound_a = 1.0 / math.sqrt(rank)
    a = jax.random.uniform(k_a, (in_dim, rank), jnp.float32,
                           minval=-bound_a, maxval=bound_a)
    bb = jnp.zeros((rank, out_dim), jnp.float32)              # LoraLayer.B = 0
    return w, bias, a, bb


if __name__ == "__main__":
    # --- small case (toy shapes, single grid cell) ---------------------------
    batch, seq, in_dim, out_dim, rank = 2, 8, 32, 32, 8
    alpha = 2.0
    key = jax.random.PRNGKey(0)
    k_x, k_p, k_bb = jax.random.split(key, 3)
    x = jax.random.normal(k_x, (batch, seq, in_dim), jnp.float32)
    w, bias, a, bb = init_params(k_p, in_dim, out_dim, rank)
    # Make B nonzero so the LoRA path is actually exercised numerically.
    bb = bb + 0.01 * jax.random.normal(k_bb, bb.shape, jnp.float32)
    ref = x @ w + bias + alpha * (x @ a) @ bb

    out_f32 = jax.block_until_ready(
        linear_with_lora(x, w, bias, a, bb, alpha, compute_dtype=jnp.float32))
    assert out_f32.shape == (batch, seq, out_dim)
    assert jnp.allclose(out_f32, ref, atol=2e-3, rtol=2e-3), "f32 mismatch"

    # Default bf16 compute path (f32 accumulation), looser tolerance.
    out_bf16 = jax.block_until_ready(linear_with_lora(x, w, bias, a, bb, alpha))
    assert jnp.allclose(out_bf16, ref, atol=5e-2, rtol=5e-2), "bf16 mismatch"

    # --- multi-tile streamed-K case: grid (3, 3, 2) exercises M/N/K tiling,
    # zero padding, the K accumulator, the resident-A K-tile slice and the
    # xa-reuse-across-N path ---------------------------------------------------
    batch2, seq2, in2, out2, rank2 = 3, 13, 200, 320, 8
    k_x2, k_p2, k_bb2 = jax.random.split(jax.random.PRNGKey(1), 3)
    x2 = jax.random.normal(k_x2, (batch2, seq2, in2), jnp.float32)
    w2, b2, a2, bb2 = init_params(k_p2, in2, out2, rank2)
    bb2 = bb2 + 0.01 * jax.random.normal(k_bb2, bb2.shape, jnp.float32)
    ref2 = x2 @ w2 + b2 + 1.5 * (x2 @ a2) @ bb2

    out_tiled = jax.block_until_ready(
        linear_with_lora(x2, w2, b2, a2, bb2, 1.5, tm=16, tn=128, tk=128,
                         compute_dtype=jnp.float32, k_resident=False))
    assert out_tiled.shape == (batch2, seq2, out2)
    assert jnp.allclose(out_tiled, ref2, atol=5e-3, rtol=5e-3), "tiled mismatch"

    # --- decode-style case: single row tile + several N tiles -> xa reuse is
    # dropped and N is "parallel" (v7x 2-TC path); K-resident auto; params
    # prepared once and reused -------------------------------------------------
    params2 = prepare_lora_linear_params(w2, b2, a2, bb2, 1.5, tn=128, tk=1024)
    out_dec = jax.block_until_ready(linear_with_lora_apply(x2, params2, tm=512))
    assert out_dec.shape == (batch2, seq2, out2)
    assert jnp.allclose(out_dec, ref2, atol=5e-2, rtol=5e-2), "decode mismatch"

    print("KERNEL_OK")
</pallas_src>

<mosaic_0001>
module attributes {stable_mosaic.version = 11 : i64} {
  func.func @_lora_linear_kernel(%arg0: i32, %arg1: i32, %arg2: i32, %arg3: memref<16x128xf32, #tpu.memory_space<vmem>>, %arg4: memref<128x128xf32, #tpu.memory_space<vmem>>, %arg5: memref<128x128xf32, #tpu.memory_space<vmem>>, %arg6: memref<128x128xf32, #tpu.memory_space<vmem>>, %arg7: memref<1x128xf32, #tpu.memory_space<vmem>>, %arg8: memref<16x128xf32, #tpu.memory_space<vmem>>, %arg9: memref<16x128xf32, #tpu.memory_space<vmem>>, %arg10: memref<16x128xf32, #tpu.memory_space<vmem>>) attributes {dimension_semantics = [#tpu.dimension_semantics<parallel>, #tpu.dimension_semantics<arbitrary>, #tpu.dimension_semantics<arbitrary>], iteration_bounds = array<i64: 1, 1, 1>, scalar_prefetch = 0 : i64, scratch_operands = 2 : i64, tpu.core_type = #tpu.core_type<tc>, window_params = [{transform_indices = @transform_0, window_bounds = array<i64: 16, 128>}, {transform_indices = @transform_1, window_bounds = array<i64: 128, 128>}, {pipeline_mode = #tpu.pipeline_mode<synchronous>, transform_indices = @transform_2, window_bounds = array<i64: 128, 128>}, {transform_indices = @transform_3, window_bounds = array<i64: 128, 128>}, {transform_indices = @transform_4, window_bounds = array<i64: 1, 128>}, {transform_indices = @transform_5, window_bounds = array<i64: 16, 128>}]} {
    %c0_i32 = arith.constant 0 : i32
    %0 = arith.cmpi eq, %arg2, %c0_i32 : i32
    %1 = arith.extui %0 : i1 to i32
    %c0_i32_0 = arith.constant 0 : i32
    %2 = arith.cmpi ne, %1, %c0_i32_0 : i32
    scf.if %2 {
      %cst_15 = arith.constant 0.000000e+00 : f32
      %20 = vector.broadcast %cst_15 : f32 to vector<16x128xf32>
      %c0_16 = arith.constant 0 : index
      %c0_17 = arith.constant 0 : index
      %21 = vector.load %arg9[%c0_16, %c0_17] : memref<16x128xf32, #tpu.memory_space<vmem>>, vector<16x128xf32>
      tpu.vector_store %arg9[%c0_16, %c0_17], %20 {strides = array<i32>} : memref<16x128xf32, #tpu.memory_space<vmem>>, vector<16x128xf32>,
    } else {
    }
    %c0 = arith.constant 0 : index
    %c0_1 = arith.constant 0 : index
    %3 = vector.load %arg3[%c0, %c0_1] : memref<16x128xf32, #tpu.memory_space<vmem>>, vector<16x128xf32>
    %c0_2 = arith.constant 0 : index
    %c0_3 = arith.constant 0 : index
    %4 = vector.load %arg9[%c0_2, %c0_3] : memref<16x128xf32, #tpu.memory_space<vmem>>, vector<16x128xf32>
    %c0_4 = arith.constant 0 : index
    %c0_5 = arith.constant 0 : index
    %5 = vector.load %arg4[%c0_4, %c0_5] : memref<128x128xf32, #tpu.memory_space<vmem>>, vector<128x128xf32>
    %cst = arith.constant dense<0.000000e+00> : vector<16x128xf32>
    %6 = tpu.matmul %3, %5, %cst {dimension_numbers = #tpu.dot_dimension_numbers<[1], [0], [0], [1], [0, 0, 1, 1], [], []>} : vector<16x128xf32>, vector<128x128xf32>, vector<16x128xf32> -> vector<16x128xf32>
    %7 = arith.addf %4, %6 : vector<16x128xf32>
    %c0_6 = arith.constant 0 : index
    %c0_7 = arith.constant 0 : index
    %8 = vector.load %arg9[%c0_6, %c0_7] : memref<16x128xf32, #tpu.memory_space<vmem>>, vector<16x128xf32>
    tpu.vector_store %arg9[%c0_6, %c0_7], %7 {strides = array<i32>} : memref<16x128xf32, #tpu.memory_space<vmem>>, vector<16x128xf32>,
    %c0_i32_8 = arith.constant 0 : i32
    %9 = arith.cmpi eq, %arg1, %c0_i32_8 : i32
    %c0_i32_9 = arith.constant 0 : i32
    %10 = arith.cmpi eq, %arg2, %c0_i32_9 : i32
    %11 = arith.andi %9, %10 : i1
    %12 = arith.extui %11 : i1 to i32
    %c0_i32_10 = arith.constant 0 : i32
    %13 = arith.cmpi ne, %12, %c0_i32_10 : i32
    scf.if %13 {
      %cst_15 = arith.constant 0.000000e+00 : f32
      %20 = vector.broadcast %cst_15 : f32 to vector<16x128xf32>
      %c0_16 = arith.constant 0 : index
      %c0_17 = arith.constant 0 : index
      %21 = vector.load %arg10[%c0_16, %c0_17] : memref<16x128xf32, #tpu.memory_space<vmem>>, vector<16x128xf32>
      tpu.vector_store %arg10[%c0_16, %c0_17], %20 {strides = array<i32>} : memref<16x128xf32, #tpu.memory_space<vmem>>, vector<16x128xf32>,
    } else {
    }
    %c0_i32_11 = arith.constant 0 : i32
    %14 = arith.cmpi eq, %arg1, %c0_i32_11 : i32
    %15 = arith.extui %14 : i1 to i32
    %c0_i32_12 = arith.constant 0 : i32
    %16 = arith.cmpi ne, %15, %c0_i32_12 : i32
    scf.if %16 {
      %c0_15 = arith.constant 0 : index
      %c0_16 = arith.constant 0 : index
      %20 = vector.load %arg5[%c0_15, %c0_16] : memref<128x128xf32, #tpu.memory_space<vmem>>, vector<128x128xf32>
      %c0_17 = arith.constant 0 : index
      %c0_18 = arith.constant 0 : index
      %21 = vector.load %arg10[%c0_17, %c0_18] : memref<16x128xf32, #tpu.memory_space<vmem>>, vector<16x128xf32>
      %cst_19 = arith.constant dense<0.000000e+00> : vector<16x128xf32>
      %22 = tpu.matmul %3, %20, %cst_19 {dimension_numbers = #tpu.dot_dimension_numbers<[1], [0], [0], [1], [0, 0, 1, 1], [], []>} : vector<16x128xf32>, vector<128x128xf32>, vector<16x128xf32> -> vector<16x128xf32>
      %23 = arith.addf %21, %22 : vector<16x128xf32>
      %c0_20 = arith.constant 0 : index
      %c0_21 = arith.constant 0 : index
      %24 = vector.load %arg10[%c0_20, %c0_21] : memref<16x128xf32, #tpu.memory_space<vmem>>, vector<16x128xf32>
      tpu.vector_store %arg10[%c0_20, %c0_21], %23 {strides = array<i32>} : memref<16x128xf32, #tpu.memory_space<vmem>>, vector<16x128xf32>,
    } else {
    }
    %c0_i32_13 = arith.constant 0 : i32
    %17 = arith.cmpi eq, %arg2, %c0_i32_13 : i32
    %18 = arith.extui %17 : i1 to i32
    %c0_i32_14 = arith.constant 0 : i32
    %19 = arith.cmpi ne, %18, %c0_i32_14 : i32
    scf.if %19 {
      %c0_15 = arith.constant 0 : index
      %c0_16 = arith.constant 0 : index
      %20 = vector.load %arg10[%c0_15, %c0_16] : memref<16x128xf32, #tpu.memory_space<vmem>>, vector<16x128xf32>
      %c0_17 = arith.constant 0 : index
      %c0_18 = arith.constant 0 : index
      %21 = vector.load %arg6[%c0_17, %c0_18] : memref<128x128xf32, #tpu.memory_space<vmem>>, vector<128x128xf32>
      %cst_19 = arith.constant dense<0.000000e+00> : vector<16x128xf32>
      %22 = tpu.matmul %20, %21, %cst_19 {dimension_numbers = #tpu.dot_dimension_numbers<[1], [0], [0], [1], [0, 0, 1, 1], [], []>} : vector<16x128xf32>, vector<128x128xf32>, vector<16x128xf32> -> vector<16x128xf32>
      %c0_20 = arith.constant 0 : index
      %c0_21 = arith.constant 0 : index
      %23 = vector.load %arg9[%c0_20, %c0_21] : memref<16x128xf32, #tpu.memory_space<vmem>>, vector<16x128xf32>
      %c0_22 = arith.constant 0 : index
      %c0_23 = arith.constant 0 : index
      %24 = vector.load %arg7[%c0_22, %c0_23] : memref<1x128xf32, #tpu.memory_space<vmem>>, vector<1x128xf32>
      %25 = vector.broadcast %24 : vector<1x128xf32> to vector<16x128xf32>
      %26 = arith.addf %23, %25 : vector<16x128xf32>
      %27 = arith.addf %26, %22 : vector<16x128xf32>
      %c0_24 = arith.constant 0 : index
      %c0_25 = arith.constant 0 : index
      %28 = vector.load %arg8[%c0_24, %c0_25] : memref<16x128xf32, #tpu.memory_space<vmem>>, vector<16x128xf32>
      tpu.vector_store %arg8[%c0_24, %c0_25], %27 {strides = array<i32>} : memref<16x128xf32, #tpu.memory_space<vmem>>, vector<16x128xf32>,
    } else {
    }
    return
  }
  func.func @transform_0(%arg0: i32, %arg1: i32, %arg2: i32) -> (i32, i32) {
    %c0_i32 = arith.constant 0 : i32
    return %arg0, %arg2 : i32, i32
  }
  func.func @transform_1(%arg0: i32, %arg1: i32, %arg2: i32) -> (i32, i32) {
    %c0_i32 = arith.constant 0 : i32
    return %arg2, %arg1 : i32, i32
  }
  func.func @transform_2(%arg0: i32, %arg1: i32, %arg2: i32) -> (i32, i32) {
    %c0_i32 = arith.constant 0 : i32
    %c0_i32_0 = arith.constant 0 : i32
    %c0_i32_1 = arith.constant 0 : i32
    return %c0_i32, %c0_i32_0 : i32, i32
  }
  func.func @transform_3(%arg0: i32, %arg1: i32, %arg2: i32) -> (i32, i32) {
    %c0_i32 = arith.constant 0 : i32
    %c0_i32_0 = arith.constant 0 : i32
    return %c0_i32, %arg1 : i32, i32
  }
  func.func @transform_4(%arg0: i32, %arg1: i32, %arg2: i32) -> (i32, i32) {
    %c0_i32 = arith.constant 0 : i32
    %c0_i32_0 = arith.constant 0 : i32
    return %c0_i32, %arg1 : i32, i32
  }
  func.func @transform_5(%arg0: i32, %arg1: i32, %arg2: i32) -> (i32, i32) {
    %c0_i32 = arith.constant 0 : i32
    return %arg0, %arg1 : i32, i32
  }
}

</mosaic_0001>

<llo_original>
// kernel: tpu_custom_call.1
$region0: #{tpu_custom_call.1}
  #allocation0 [shape = 'u32[]', space=smem, size = 0x4, offset = 0x4, fixed_abs, tag = 'smem constant byte address 0x4 - core index']
  #allocation1 [shape = 'u32[144,128]{1,0:T(1,128)}', space=vmem, size = 0x12000, scoped, tag = 'internal scratch']
  #allocation2 [shape = 'f32[16,128]{1,0:T(8,128)}', space=vmem, size = 0x2000, scoped, tag = 'scratch operand']
  #allocation3 [shape = 'f32[16,128]{1,0:T(8,128)}', space=vmem, size = 0x2000, scoped, tag = 'scratch operand']
  %s0 = inlined_call_operand.hbm [shape: f32[16,128], index: 0, kind: input, shape index: {}]
  %s1 = inlined_call_operand.hbm [shape: f32[128,128], index: 1, kind: input, shape index: {}]
  %s2 = inlined_call_operand.hbm [shape: f32[128,128], index: 2, kind: input, shape index: {}]
  %s3 = inlined_call_operand.hbm [shape: f32[128,128], index: 3, kind: input, shape index: {}]
  %s4 = inlined_call_operand.vmem [shape: f32[1,128], index: 4, kind: input, shape index: {}]
  %s5 = inlined_call_operand.hbm [shape: f32[16,128], index: 5, kind: output, shape index: {}]
  %s6 = sld [smem:[#allocation0]]
  $region62: #{tpu_custom_call.1} parent=0
    _
  %s8 = ssub.s32 1, %s6
  %s9 = scalar_select 0, %s8, %s6
  $region1: #{tpu_custom_call.1} parent=0
    #allocation4 [shape = 'u8[8192]{0}', space=vmem, size = 0x2000, scoped, tag = 'input window, operand 0, single buffered']
    #allocation5 [shape = 's32[1]{0}', space=sflag, size = 0x4, scoped, tag = 'scoped memory for tpu_custom_call.1']
    #allocation6 [shape = 's32[1]{0}', space=sflag, size = 0x4, scoped, tag = 'scoped memory for tpu_custom_call.1']
    #allocation7 [shape = 'u8[65536]{0}', space=vmem, size = 0x10000, scoped, tag = 'input window, operand 1, single buffered']
    #allocation8 [shape = 's32[1]{0}', space=sflag, size = 0x4, scoped, tag = 'scoped memory for tpu_custom_call.1']
    #allocation9 [shape = 'u8[65536]{0}', space=vmem, size = 0x10000, scoped, tag = 'input window, operand 2, single buffered']
    #allocation10 [shape = 'u8[65536]{0}', space=vmem, size = 0x10000, scoped, tag = 'input window, operand 3, single buffered']
    #allocation11 [shape = 's32[1]{0}', space=sflag, size = 0x4, scoped, tag = 'scoped memory for tpu_custom_call.1']
    #allocation12 [shape = 'u8[8192]{0}', space=vmem, size = 0x2000, scoped, tag = 'output window, operand 0, single buffered']
    %10 = vsyncpa [#allocation5], 0
    %11 = vsyncpa [#allocation8], 0
    %12 = vsyncpa [#allocation11], 0
    %13 = vsyncpa [#allocation6], 0
    // Predicated region
    $region2: #{tpu_custom_call.1} parent=1 // pred_check
      _
    $region3: #{tpu_custom_call.1} parent=1 // pred_check_branch
      %15 = sbr.rel (0) target = $region5
    $region4: #{tpu_custom_call.1} parent=1 // pred_region
      %s17 = ssub.s32 256, 256
      %18 = vsyncadd [#allocation5], %s17
      %s19 = sshll.u32 [#allocation4], 4
      %s20 = int_to_ptr.vmem [resolvable:$true] %s19
      %25 = dma.hbm_to_vmem [thread:$0]  %s0, 256, %s20, [#allocation5], 128, 128, 8
    $region5: #{tpu_custom_call.1} parent=1 // pred_fallthru
      _
    // Predicated region
    $region6: #{tpu_custom_call.1} parent=1 // pred_check
      _
    $region7: #{tpu_custom_call.1} parent=1 // pred_check_branch
      %27 = sbr.rel (0) target = $region9
    $region8: #{tpu_custom_call.1} parent=1 // pred_region
      %s29 = ssub.s32 2048, 2048
      %30 = vsyncadd [#allocation8], %s29
      %s31 = sshll.u32 [#allocation7], 4
      %s32 = int_to_ptr.vmem [resolvable:$true] %s31
      %37 = dma.hbm_to_vmem [thread:$0]  %s1, 2048, %s32, [#allocation8], 128, 128, 8
    $region9: #{tpu_custom_call.1} parent=1 // pred_fallthru
      _
    // Predicated region
    $region10: #{tpu_custom_call.1} parent=1 // pred_check
      _
    $region11: #{tpu_custom_call.1} parent=1 // pred_check_branch
      %39 = sbr.rel (0) target = $region13
    $region12: #{tpu_custom_call.1} parent=1 // pred_region
      %s41 = ssub.s32 2048, 2048
      %42 = vsyncadd [#allocation8], %s41
      %s43 = sshll.u32 [#allocation9], 4
      %s44 = int_to_ptr.vmem [resolvable:$true] %s43
      %49 = dma.hbm_to_vmem [thread:$0]  %s2, 2048, %s44, [#allocation8], 128, 128, 8
    $region13: #{tpu_custom_call.1} parent=1 // pred_fallthru
      _
    // Predicated region
    $region14: #{tpu_custom_call.1} parent=1 // pred_check
      _
    $region15: #{tpu_custom_call.1} parent=1 // pred_check_branch
      %51 = sbr.rel (0) target = $region17
    $region16: #{tpu_custom_call.1} parent=1 // pred_region
      %s53 = ssub.s32 2048, 2048
      %54 = vsyncadd [#allocation11], %s53
      %s55 = sshll.u32 [#allocation10], 4
      %s56 = int_to_ptr.vmem [resolvable:$true] %s55
      %61 = dma.hbm_to_vmem [thread:$0]  %s3, 2048, %s56, [#allocation11], 128, 128, 8
    $region17: #{tpu_custom_call.1} parent=1 // pred_fallthru
      _
    // Predicated region
    $region18: #{tpu_custom_call.1} parent=1 // pred_check
      _
    $region19: #{tpu_custom_call.1} parent=1 // pred_check_branch
      %63 = sbr.rel (0) target = $region21
    $region20: #{tpu_custom_call.1} parent=1 // pred_region
      _
    $region21: #{tpu_custom_call.1} parent=1 // pred_fallthru
      _
    // Predicated region
    $region22: #{tpu_custom_call.1} parent=1 // pred_check
      _
    $region23: #{tpu_custom_call.1} parent=1 // pred_check_branch
      %65 = sbr.rel (0) target = $region25
    $region24: #{tpu_custom_call.1} parent=1 // pred_region
      %66 = dma.done [#allocation5], 256
    $region25: #{tpu_custom_call.1} parent=1 // pred_fallthru
      _
    // Predicated region
    $region26: #{tpu_custom_call.1} parent=1 // pred_check
      _
    $region27: #{tpu_custom_call.1} parent=1 // pred_check_branch
      %68 = sbr.rel (0) target = $region29
    $region28: #{tpu_custom_call.1} parent=1 // pred_region
      %69 = dma.done [#allocation8], 2048
    $region29: #{tpu_custom_call.1} parent=1 // pred_fallthru
      _
    // Predicated region
    $region30: #{tpu_custom_call.1} parent=1 // pred_check
      _
    $region31: #{tpu_custom_call.1} parent=1 // pred_check_branch
      %71 = sbr.rel (0) target = $region33
    $region32: #{tpu_custom_call.1} parent=1 // pred_region
      %72 = dma.done [#allocation8], 2048
    $region33: #{tpu_custom_call.1} parent=1 // pred_fallthru
      _
    // Predicated region
    $region34: #{tpu_custom_call.1} parent=1 // pred_check
      _
    $region35: #{tpu_custom_call.1} parent=1 // pred_check_branch
      %74 = sbr.rel (0) target = $region37
    $region36: #{tpu_custom_call.1} parent=1 // pred_region
      %75 = dma.done [#allocation11], 2048
    $region37: #{tpu_custom_call.1} parent=1 // pred_fallthru
      _
    %p76 = scmp.eq.s32.totalorder 0, 0
    // Predicated region
    $region38: #{tpu_custom_call.1} parent=1 // pred_check
      %p77 = pneg %p76
    $region39: #{tpu_custom_call.1} parent=1 // pred_check_branch
      %79 = sbr.rel (%p77) target = $region41
    $region40: #{tpu_custom_call.1} parent=1 // pred_region
      %80 = vst [vmem:[#allocation2] sm:$0xff] 0.0
      %81 = vst [vmem:[#allocation2 + $0x8] sm:$0xff] 0.0
    $region41: #{tpu_custom_call.1} parent=1 // pred_fallthru
      _
    %v82 = vld [vmem:[#allocation4] sm:$0xff]
    %v83 = vld [vmem:[#allocation4 + $0x8] sm:$0xff]
    %v84 = vld [vmem:[#allocation2] sm:$0xff]
    %v85 = vld [vmem:[#allocation2 + $0x8] sm:$0xff]
    %v86 = vld [vmem:[#allocation7] sm:$0xff]
    %v87 = vld [vmem:[#allocation7 + $0x8] sm:$0xff]
    %v88 = vld [vmem:[#allocation7 + $0x10] sm:$0xff]
    %v89 = vld [vmem:[#allocation7 + $0x18] sm:$0xff]
    %v90 = vld [vmem:[#allocation7 + $0x20] sm:$0xff]
    %v91 = vld [vmem:[#allocation7 + $0x28] sm:$0xff]
    %v92 = vld [vmem:[#allocation7 + $0x30] sm:$0xff]
    %v93 = vld [vmem:[#allocation7 + $0x38] sm:$0xff]
    %v94 = vld [vmem:[#allocation7 + $0x40] sm:$0xff]
    %v95 = vld [vmem:[#allocation7 + $0x48] sm:$0xff]
    %v96 = vld [vmem:[#allocation7 + $0x50] sm:$0xff]
    %v97 = vld [vmem:[#allocation7 + $0x58] sm:$0xff]
    %v98 = vld [vmem:[#allocation7 + $0x60] sm:$0xff]
    %v99 = vld [vmem:[#allocation7 + $0x68] sm:$0xff]
    %v100 = vld [vmem:[#allocation7 + $0x70] sm:$0xff]
    %v101 = vld [vmem:[#allocation7 + $0x78] sm:$0xff]
    %102 = vmatprep.subr.mxu0 0.0
    %103 = vmatpush1.msra.mxu0 %v86
    %104 = vmatprep.subr.mxu0 0.0
    %105 = vmatpush1.msra.mxu0 %v87
    %106 = vmatprep.subr.mxu0 0.0
    %107 = vmatpush1.msra.mxu0 %v88
    %108 = vmatprep.subr.mxu0 0.0
    %109 = vmatpush1.msra.mxu0 %v89
    %110 = vmatprep.subr.mxu0 0.0
    %111 = vmatpush1.msra.mxu0 %v90
    %112 = vmatprep.subr.mxu0 0.0
    %113 = vmatpush1.msra.mxu0 %v91
    %114 = vmatprep.subr.mxu0 0.0
    %115 = vmatpush1.msra.mxu0 %v92
    %116 = vmatprep.subr.mxu0 0.0
    %117 = vmatpush1.msra.mxu0 %v93
    %118 = vmatprep.subr.mxu0 0.0
    %119 = vmatpush1.msra.mxu0 %v94
    %120 = vmatprep.subr.mxu0 0.0
    %121 = vmatpush1.msra.mxu0 %v95
    %122 = vmatprep.subr.mxu0 0.0
    %123 = vmatpush1.msra.mxu0 %v96
    %124 = vmatprep.subr.mxu0 0.0
    %125 = vmatpush1.msra.mxu0 %v97
    %126 = vmatprep.subr.mxu0 0.0
    %127 = vmatpush1.msra.mxu0 %v98
    %128 = vmatprep.subr.mxu0 0.0
    %129 = vmatpush1.msra.mxu0 %v99
    %130 = vmatprep.subr.mxu0 0.0
    %131 = vmatpush1.msra.mxu0 %v100
    %132 = vmatprep.subr.mxu0 0.0
    %133 = vmatpush1.msra.mxu0 %v101
    %134 = vmatprep.subr.mxu0 0.0
    %135 = vmatpush1.msra.mxu0 0.0
    %136 = vmatprep.subr.mxu0 0.0
    %137 = vmatpush1.msra.mxu0 0.0
    %138 = vmatprep.subr.mxu0 0.0
    %139 = vmatpush1.msra.mxu0 0.0
    %140 = vmatprep.subr.mxu0 0.0
    %141 = vmatpush1.msra.mxu0 0.0
    %142 = vmatprep.subr.mxu0 0.0
    %143 = vmatpush1.msra.mxu0 0.0
    %144 = vmatprep.subr.mxu0 0.0
    %145 = vmatpush1.msra.mxu0 0.0
    %146 = vmatprep.subr.mxu0 0.0
    %147 = vmatpush1.msra.mxu0 0.0
    %148 = vmatprep.subr.mxu0 0.0
    %149 = vmatpush1.msra.mxu0 0.0
    %150 = vmatprep.subr.mxu0 0.0
    %151 = vmatpush1.msra.mxu0 0.0
    %152 = vmatprep.subr.mxu0 0.0
    %153 = vmatpush1.msra.mxu0 0.0
    %154 = vmatprep.subr.mxu0 0.0
    %155 = vmatpush1.msra.mxu0 0.0
    %156 = vmatprep.subr.mxu0 0.0
    %157 = vmatpush1.msra.mxu0 0.0
    %158 = vmatprep.subr.mxu0 0.0
    %159 = vmatpush1.msra.mxu0 0.0
    %160 = vmatprep.subr.mxu0 0.0
    %161 = vmatpush1.msra.mxu0 0.0
    %162 = vmatprep.subr.mxu0 0.0
    %163 = vmatpush1.msra.mxu0 0.0
    %164 = vmatprep.subr.mxu0 0.0
    %165 = vmatpush1.msra.mxu0 0.0
    %166 = vmatprep.mubr.f32.mxu0 0.0
    %167 = vmatmul.mubr.f32.gmra.mrb[0].mxu0 %v82
    %v168 = vpop.f32.mrb[0].mxu0
    %v169 = vadd.f32 0.0, %v168
    %v170 = vpop.f32.mrb[0].mxu0
    %171 = vmatprep.mubr.f32.mxu0 0.0
    %172 = vmatmul.mubr.f32.gmra.mrb[0].mxu0 %v83
    %v173 = vpop.f32.mrb[0].mxu0
    %v174 = vadd.f32 0.0, %v173
    %v175 = vpop.f32.mrb[0].mxu0
    %176 = vdwg.mxu0
    %v177 = vadd.f32 %v84, %v169
    %v178 = vadd.f32 %v85, %v174
    %179 = vst [vmem:[#allocation2] sm:$0xff] %v177
    %180 = vst [vmem:[#allocation2 + $0x8] sm:$0xff] %v178
    %p181 = scmp.eq.s32.totalorder 0, 0
    %p182 = pnand %p181, %p76
    %p183 = pneg %p182
    // Predicated region
    $region42: #{tpu_custom_call.1} parent=1 // pred_check
      _
    $region43: #{tpu_custom_call.1} parent=1 // pred_check_branch
      %185 = sbr.rel (%p182) target = $region45
    $region44: #{tpu_custom_call.1} parent=1 // pred_region
      %186 = vst [vmem:[#allocation3] sm:$0xff] 0.0
      %187 = vst [vmem:[#allocation3 + $0x8] sm:$0xff] 0.0
    $region45: #{tpu_custom_call.1} parent=1 // pred_fallthru
      _
    // Predicated region
    $region46: #{tpu_custom_call.1} parent=1 // pred_check
      %p188 = pneg %p181
    $region47: #{tpu_custom_call.1} parent=1 // pred_check_branch
      %190 = sbr.rel (%p188) target = $region49
    $region48: #{tpu_custom_call.1} parent=1 // pred_region
      %v191 = vld [vmem:[#allocation9] sm:$0xff]
      %v192 = vld [vmem:[#allocation9 + $0x8] sm:$0xff]
      %v193 = vld [vmem:[#allocation9 + $0x10] sm:$0xff]
      %v194 = vld [vmem:[#allocation9 + $0x18] sm:$0xff]
      %v195 = vld [vmem:[#allocation9 + $0x20] sm:$0xff]
      %v196 = vld [vmem:[#allocation9 + $0x28] sm:$0xff]
      %v197 = vld [vmem:[#allocation9 + $0x30] sm:$0xff]
      %v198 = vld [vmem:[#allocation9 + $0x38] sm:$0xff]
      %v199 = vld [vmem:[#allocation9 + $0x40] sm:$0xff]
      %v200 = vld [vmem:[#allocation9 + $0x48] sm:$0xff]
      %v201 = vld [vmem:[#allocation9 + $0x50] sm:$0xff]
      %v202 = vld [vmem:[#allocation9 + $0x58] sm:$0xff]
      %v203 = vld [vmem:[#allocation9 + $0x60] sm:$0xff]
      %v204 = vld [vmem:[#allocation9 + $0x68] sm:$0xff]
      %v205 = vld [vmem:[#allocation9 + $0x70] sm:$0xff]
      %v206 = vld [vmem:[#allocation9 + $0x78] sm:$0xff]
      %v207 = vld [vmem:[#allocation3] sm:$0xff]
      %v208 = vld [vmem:[#allocation3 + $0x8] sm:$0xff]
      %209 = vmatprep.subr.mxu0 0.0
      %210 = vmatpush1.msra.mxu0 %v191
      %211 = vmatprep.subr.mxu0 0.0
      %212 = vmatpush1.msra.mxu0 %v192
      %213 = vmatprep.subr.mxu0 0.0
      %214 = vmatpush1.msra.mxu0 %v193
      %215 = vmatprep.subr.mxu0 0.0
      %216 = vmatpush1.msra.mxu0 %v194
      %217 = vmatprep.subr.mxu0 0.0
      %218 = vmatpush1.msra.mxu0 %v195
      %219 = vmatprep.subr.mxu0 0.0
      %220 = vmatpush1.msra.mxu0 %v196
      %221 = vmatprep.subr.mxu0 0.0
      %222 = vmatpush1.msra.mxu0 %v197
      %223 = vmatprep.subr.mxu0 0.0
      %224 = vmatpush1.msra.mxu0 %v198
      %225 = vmatprep.subr.mxu0 0.0
      %226 = vmatpush1.msra.mxu0 %v199
      %227 = vmatprep.subr.mxu0 0.0
      %228 = vmatpush1.msra.mxu0 %v200
      %229 = vmatprep.subr.mxu0 0.0
      %230 = vmatpush1.msra.mxu0 %v201
      %231 = vmatprep.subr.mxu0 0.0
      %232 = vmatpush1.msra.mxu0 %v202
      %233 = vmatprep.subr.mxu0 0.0
      %234 = vmatpush1.msra.mxu0 %v203
      %235 = vmatprep.subr.mxu0 0.0
      %236 = vmatpush1.msra.mxu0 %v204
      %237 = vmatprep.subr.mxu0 0.0
      %238 = vmatpush1.msra.mxu0 %v205
      %239 = vmatprep.subr.mxu0 0.0
      %240 = vmatpush1.msra.mxu0 %v206
      %241 = vmatprep.subr.mxu0 0.0
      %242 = vmatpush1.msra.mxu0 0.0
      %243 = vmatprep.subr.mxu0 0.0
      %244 = vmatpush1.msra.mxu0 0.0
      %245 = vmatprep.subr.mxu0 0.0
      %246 = vmatpush1.msra.mxu0 0.0
      %247 = vmatprep.subr.mxu0 0.0
      %248 = vmatpush1.msra.mxu0 0.0
      %249 = vmatprep.subr.mxu0 0.0
      %250 = vmatpush1.msra.mxu0 0.0
      %251 = vmatprep.subr.mxu0 0.0
      %252 = vmatpush1.msra.mxu0 0.0
      %253 = vmatprep.subr.mxu0 0.0
      %254 = vmatpush1.msra.mxu0 0.0
      %255 = vmatprep.subr.mxu0 0.0
      %256 = vmatpush1.msra.mxu0 0.0
      %257 = vmatprep.subr.mxu0 0.0
      %258 = vmatpush1.msra.mxu0 0.0
      %259 = vmatprep.subr.mxu0 0.0
      %260 = vmatpush1.msra.mxu0 0.0
      %261 = vmatprep.subr.mxu0 0.0
      %262 = vmatpush1.msra.mxu0 0.0
      %263 = vmatprep.subr.mxu0 0.0
      %264 = vmatpush1.msra.mxu0 0.0
      %265 = vmatprep.subr.mxu0 0.0
      %266 = vmatpush1.msra.mxu0 0.0
      %267 = vmatprep.subr.mxu0 0.0
      %268 = vmatpush1.msra.mxu0 0.0
      %269 = vmatprep.subr.mxu0 0.0
      %270 = vmatpush1.msra.mxu0 0.0
      %271 = vmatprep.subr.mxu0 0.0
      %272 = vmatpush1.msra.mxu0 0.0
      %273 = vmatprep.mubr.f32.mxu0 0.0
      %274 = vmatmul.mubr.f32.gmra.mrb[0].mxu0 %v82
      %v275 = vpop.f32.mrb[0].mxu0
      %v276 = vadd.f32 0.0, %v275
      %v277 = vpop.f32.mrb[0].mxu0
      %278 = vmatprep.mubr.f32.mxu0 0.0
      %279 = vmatmul.mubr.f32.gmra.mrb[0].mxu0 %v83
      %v280 = vpop.f32.mrb[0].mxu0
      %v281 = vadd.f32 0.0, %v280
      %v282 = vpop.f32.mrb[0].mxu0
      %283 = vdwg.mxu0
      %v284 = vadd.f32 %v207, %v276
      %v285 = vadd.f32 %v208, %v281
      %286 = vst [vmem:[#allocation3] sm:$0xff] %v284
      %287 = vst [vmem:[#allocation3 + $0x8] sm:$0xff] %v285
    $region49: #{tpu_custom_call.1} parent=1 // pred_fallthru
      _
    // Predicated region
    $region50: #{tpu_custom_call.1} parent=1 // pred_check
      %p288 = pneg %p76
    $region51: #{tpu_custom_call.1} parent=1 // pred_check_branch
      %290 = sbr.rel (%p288) target = $region53
    $region52: #{tpu_custom_call.1} parent=1 // pred_region
      %v291 = vld [vmem:[#allocation3] sm:$0xff]
      %v292 = vld [vmem:[#allocation3 + $0x8] sm:$0xff]
      %v293 = vld [vmem:[#allocation10] sm:$0xff]
      %v294 = vld [vmem:[#allocation10 + $0x8] sm:$0xff]
      %v295 = vld [vmem:[#allocation10 + $0x10] sm:$0xff]
      %v296 = vld [vmem:[#allocation10 + $0x18] sm:$0xff]
      %v297 = vld [vmem:[#allocation10 + $0x20] sm:$0xff]
      %v298 = vld [vmem:[#allocation10 + $0x28] sm:$0xff]
      %v299 = vld [vmem:[#allocation10 + $0x30] sm:$0xff]
      %v300 = vld [vmem:[#allocation10 + $0x38] sm:$0xff]
      %v301 = vld [vmem:[#allocation10 + $0x40] sm:$0xff]
      %v302 = vld [vmem:[#allocation10 + $0x48] sm:$0xff]
      %v303 = vld [vmem:[#allocation10 + $0x50] sm:$0xff]
      %v304 = vld [vmem:[#allocation10 + $0x58] sm:$0xff]
      %v305 = vld [vmem:[#allocation10 + $0x60] sm:$0xff]
      %v306 = vld [vmem:[#allocation10 + $0x68] sm:$0xff]
      %v307 = vld [vmem:[#allocation10 + $0x70] sm:$0xff]
      %v308 = vld [vmem:[#allocation10 + $0x78] sm:$0xff]
      %309 = vmatprep.subr.mxu0 0.0
      %310 = vmatpush1.msra.mxu0 %v293
      %311 = vmatprep.subr.mxu0 0.0
      %312 = vmatpush1.msra.mxu0 %v294
      %313 = vmatprep.subr.mxu0 0.0
      %314 = vmatpush1.msra.mxu0 %v295
      %315 = vmatprep.subr.mxu0 0.0
      %316 = vmatpush1.msra.mxu0 %v296
      %317 = vmatprep.subr.mxu0 0.0
      %318 = vmatpush1.msra.mxu0 %v297
      %319 = vmatprep.subr.mxu0 0.0
      %320 = vmatpush1.msra.mxu0 %v298
      %321 = vmatprep.subr.mxu0 0.0
      %322 = vmatpush1.msra.mxu0 %v299
      %323 = vmatprep.subr.mxu0 0.0
      %324 = vmatpush1.msra.mxu0 %v300
      %325 = vmatprep.subr.mxu0 0.0
      %326 = vmatpush1.msra.mxu0 %v301
      %327 = vmatprep.subr.mxu0 0.0
      %328 = vmatpush1.msra.mxu0 %v302
      %329 = vmatprep.subr.mxu0 0.0
      %330 = vmatpush1.msra.mxu0 %v303
      %331 = vmatprep.subr.mxu0 0.0
      %332 = vmatpush1.msra.mxu0 %v304
      %333 = vmatprep.subr.mxu0 0.0
      %334 = vmatpush1.msra.mxu0 %v305
      %335 = vmatprep.subr.mxu0 0.0
      %336 = vmatpush1.msra.mxu0 %v306
      %337 = vmatprep.subr.mxu0 0.0
      %338 = vmatpush1.msra.mxu0 %v307
      %339 = vmatprep.subr.mxu0 0.0
      %340 = vmatpush1.msra.mxu0 %v308
      %341 = vmatprep.subr.mxu0 0.0
      %342 = vmatpush1.msra.mxu0 0.0
      %343 = vmatprep.subr.mxu0 0.0
      %344 = vmatpush1.msra.mxu0 0.0
      %345 = vmatprep.subr.mxu0 0.0
      %346 = vmatpush1.msra.mxu0 0.0
      %347 = vmatprep.subr.mxu0 0.0
      %348 = vmatpush1.msra.mxu0 0.0
      %349 = vmatprep.subr.mxu0 0.0
      %350 = vmatpush1.msra.mxu0 0.0
      %351 = vmatprep.subr.mxu0 0.0
      %352 = vmatpush1.msra.mxu0 0.0
      %353 = vmatprep.subr.mxu0 0.0
      %354 = vmatpush1.msra.mxu0 0.0
      %355 = vmatprep.subr.mxu0 0.0
      %356 = vmatpush1.msra.mxu0 0.0
      %357 = vmatprep.subr.mxu0 0.0
      %358 = vmatpush1.msra.mxu0 0.0
      %359 = vmatprep.subr.mxu0 0.0
      %360 = vmatpush1.msra.mxu0 0.0
      %361 = vmatprep.subr.mxu0 0.0
      %362 = vmatpush1.msra.mxu0 0.0
      %363 = vmatprep.subr.mxu0 0.0
      %364 = vmatpush1.msra.mxu0 0.0
      %365 = vmatprep.subr.mxu0 0.0
      %366 = vmatpush1.msra.mxu0 0.0
      %367 = vmatprep.subr.mxu0 0.0
      %368 = vmatpush1.msra.mxu0 0.0
      %369 = vmatprep.subr.mxu0 0.0
      %370 = vmatpush1.msra.mxu0 0.0
      %371 = vmatprep.subr.mxu0 0.0
      %372 = vmatpush1.msra.mxu0 0.0
      %373 = vmatprep.mubr.f32.mxu0 0.0
      %374 = vmatmul.mubr.f32.gmra.mrb[0].mxu0 %v291
      %v375 = vpop.f32.mrb[0].mxu0
      %v376 = vadd.f32 0.0, %v375
      %v377 = vpop.f32.mrb[0].mxu0
      %378 = vmatprep.mubr.f32.mxu0 0.0
      %379 = vmatmul.mubr.f32.gmra.mrb[0].mxu0 %v292
      %v380 = vpop.f32.mrb[0].mxu0
      %v381 = vadd.f32 0.0, %v380
      %v382 = vpop.f32.mrb[0].mxu0
      %383 = vdwg.mxu0
      %v384 = vld [vmem:[#allocation2] sm:$0xff]
      %v385 = vld [vmem:[#allocation2 + $0x8] sm:$0xff]
      %v386 = vld [vmem:[%s4] sm:$0x1]
      %v388 = vlaneseq
      %v389 = vshrl.u32 %v388, 7
      %v390 = vsub.s32 0, %v389
      %v391 = vrot.slane %v386, %v390
      %v393 = vadd.f32 %v384, %v391
      %v394 = vadd.f32 %v385, %v391
      %v395 = vadd.f32 %v393, %v376
      %v396 = vadd.f32 %v394, %v381
      %397 = vst [vmem:[#allocation12] sm:$0xff] %v395
      %398 = vst [vmem:[#allocation12 + $0x8] sm:$0xff] %v396
    $region53: #{tpu_custom_call.1} parent=1 // pred_fallthru
      _
    // Predicated region
    $region54: #{tpu_custom_call.1} parent=1 // pred_check
      _
    $region55: #{tpu_custom_call.1} parent=1 // pred_check_branch
      %400 = sbr.rel (0) target = $region57
    $region56: #{tpu_custom_call.1} parent=1 // pred_region
      %s402 = ssub.s32 256, 256
      %403 = vsyncadd [#allocation6], %s402
      %s404 = sshll.u32 [#allocation12], 4
      %s405 = int_to_ptr.vmem [resolvable:$true] %s404
      %410 = dma.vmem_to_hbm [thread:$0]  %s405, 256, %s5, [#allocation6], 128, 128, 8
    $region57: #{tpu_custom_call.1} parent=1 // pred_fallthru
      _
    // Predicated region
    $region58: #{tpu_custom_call.1} parent=1 // pred_check
      _
    $region59: #{tpu_custom_call.1} parent=1 // pred_check_branch
      %412 = sbr.rel (0) target = $region61
    $region60: #{tpu_custom_call.1} parent=1 // pred_region
      %413 = dma.done [#allocation6], 256
    $region61: #{tpu_custom_call.1} parent=1 // pred_fallthru
      _
    %414 = vsyncpa [#allocation5], 1
    %415 = vsyncpa [#allocation8], 1
    %416 = vsyncpa [#allocation11], 1
    %417 = vsyncpa [#allocation6], 1

</llo_original>
